<compile_context>
chip_gen: v6e
topology: v6e:2x2x1
jax: 0.10.0
libtpu: 0.0.40
codegen_flags: <defaults>
</compile_context>

<pallas_src>
import jax
import jax.numpy as jnp
from jax import lax
from jax.experimental import pallas as pl
from jax.experimental.pallas import tpu as pltpu

_LANES = 128


def _cdiv(a, b):
    return -(-a // b)


def _round_up(a, b):
    return _cdiv(a, b) * b


def _next_pow2(n):
    return 1 << max(0, (int(n) - 1).bit_length())


def _tpu_params():
    """(n_splits, vmem_limit_bytes) derived from the local TPU generation."""
    kind = ""
    try:
        kind = jax.devices()[0].device_kind.lower()
    except Exception:
        pass
    # Single-TensorCore parts (v5e / v6e "lite", v2/v3) vs dual-core (v4/v5p/v7x).
    single_core = any(s in kind for s in ("lite", "v5e", "v6e", "v2", "v3"))
    n_splits = 1 if single_core else 2

    vmem_cap = None
    try:
        vmem_cap = int(pltpu.get_tpu_info().vmem_capacity_bytes)
    except Exception:
        vmem_cap = None
    if vmem_cap is None:
        vmem_cap = 64 * 1024 * 1024 if "7" in kind else 128 * 1024 * 1024
    # 96 MiB scoped limit on 128-MiB parts (v5e/v6e), 48 MiB on v7x's 64 MiB.
    vmem_limit = min(96 * 1024 * 1024, (vmem_cap * 3) // 4)
    return n_splits, vmem_limit


def _choose_tiling(m_rows, n_splits, vmem_limit, itemsize):
    """Pick (tile_s, chunk_s) so the resident VMEM footprint fits the limit."""
    # Per sublane row of a tile:
    #   y_pred block: 128 lanes * itemsize * 2 pipeline buffers
    #   y_true block: (tile_s, G) is lane-padded to 128 lanes in VMEM, so its
    #                 two buffers cost as much as y_pred's (waste reflected).
    per_sublane = (2 + 2) * _LANES * itemsize
    reserve = min(12 * 1024 * 1024, vmem_limit // 3)  # chunk intermediates, seg, slack
    budget = max(2 * 1024 * 1024, vmem_limit - reserve)
    tile_s = budget // per_sublane
    # Don't over-allocate for small problems and keep block_shape <= array extent.
    cap = max(8, min(_round_up(_cdiv(m_rows, n_splits), 8), (m_rows // 8) * 8))
    tile_s = max(8, min(tile_s, cap))
    tile_s = (tile_s // 8) * 8
    chunk_s = min(1024, tile_s)
    tile_s = (tile_s // chunk_s) * chunk_s
    return tile_s, chunk_s


def mse_loss_pallas(y_pred, y_true, *, n_splits=None):
    """Pallas implementation of flamo mse_loss.forward (is_masked=False).

    y_pred: (B, F, N) float; y_true: (B, F, 1) or (B, F) float -> scalar f32.
    """
    B, F, N = y_pred.shape
    R = B * F
    assert y_true.size == R, f"bad y_true shape {y_true.shape}"

    auto_splits, vmem_limit = _tpu_params()
    if n_splits is None:
        n_splits = auto_splits

    # ---- layout plumbing: free reshapes only (no transpose of y_pred) -------
    # TODO(synk): rows wider than 128 lanes (N > 128) need a two-level segment sum.
    if N > _LANES:
        raise NotImplementedError("mse_loss_pallas expects y_pred.shape[-1] <= 128")
    if _LANES % N == 0:
        n_eff = N
        yp_flat = y_pred.reshape(R * N)                      # free (contiguous)
    else:
        n_eff = _next_pow2(N)                                # divides 128
        yp_flat = jnp.pad(y_pred.reshape(R, N),
                          ((0, 0), (0, n_eff - N))).reshape(R * n_eff)

    g = _LANES // n_eff                                      # logical rows per lane-row
    L = R * n_eff
    m_rows = _cdiv(L, _LANES)
    m_use = max(m_rows, 8)                                   # min one sublane tile
    pad_elems = m_use * _LANES - L
    if pad_elems:
        # Only taken when R*N is not 128-aligned (or tiny); padded rows are
        # all-zero and pair with zero y_true rows -> they contribute exactly 0.
        yp_flat = jnp.pad(yp_flat, (0, pad_elems))
    yp2d = yp_flat.reshape(m_use, _LANES)

    yt_flat = y_true.reshape(R).astype(y_pred.dtype)
    if m_use * g != R:
        yt_flat = jnp.pad(yt_flat, (0, m_use * g - R))       # tiny (R elements)
    yt2d = yt_flat.reshape(m_use, g)

    # 0/1 segment-sum matrix: column r picks the n_eff lanes of logical row r.
    lane_idx = jnp.arange(_LANES, dtype=jnp.int32)
    seg = (lane_idx[:, None] // n_eff ==
           jnp.arange(g, dtype=jnp.int32)[None, :]).astype(jnp.float32)

    itemsize = max(jnp.dtype(y_pred.dtype).itemsize, 4)
    tile_s, chunk_s = _choose_tiling(m_use, n_splits, vmem_limit, itemsize)
    n_chunks = tile_s // chunk_s
    tiles_total = _cdiv(m_use, tile_s)
    tiles_per_split = _cdiv(tiles_total, n_splits)
    needs_mask = tiles_total * tile_s > m_use                # boundary tile has OOB sublanes
    boundary_base = (tiles_total - 1) * tile_s

    def col_index(c, i):
        # Clamp so over-coverage steps (at most n_splits-1) never go fully OOB.
        return jnp.minimum(c * tiles_per_split + i, tiles_total - 1)

    def kernel(yp_ref, yt_ref, seg_ref, o_ref, acc_ref):
        c = pl.program_id(0)
        i = pl.program_id(1)
        t = c * tiles_per_split + i                          # global tile index

        @pl.when(i == 0)
        def _init():
            acc_ref[...] = jnp.zeros_like(acc_ref)

        seg_m = seg_ref[...]

        def chunk_body(k, masked):
            if isinstance(k, int):
                off = k * chunk_s
            else:
                off = pl.multiple_of(k * chunk_s, 8)
            yp = yp_ref[pl.ds(off, chunk_s), :]
            yt = yt_ref[pl.ds(off, chunk_s), :]
            if yp.dtype != jnp.float32:
                yp = yp.astype(jnp.float32)
            if yt.dtype != jnp.float32:
                yt = yt.astype(jnp.float32)
            # Per-row sum over the last axis: (chunk_s, 128) @ (128, g) on the
            # otherwise-idle MXU.  HIGHEST keeps full f32 fidelity.
            s = jnp.dot(yp, seg_m, preferred_element_type=jnp.float32,
                        precision=jax.lax.Precision.HIGHEST)
            d = jnp.abs(s) - jnp.abs(yt)
            dsq = d * d
            if masked:
                sub = lax.broadcasted_iota(jnp.int32, (chunk_s, g), 0)
                lane = lax.broadcasted_iota(jnp.int32, (chunk_s, g), 1)
                rows = (boundary_base + off + sub) * g + lane
                dsq = jnp.where(rows < R, dsq, jnp.zeros_like(dsq))
            acc_ref[...] += jnp.sum(dsq, axis=0, keepdims=True)

        def run_tile(masked):
            if n_chunks == 1:
                chunk_body(0, masked)
            else:
                def body(k, carry):
                    chunk_body(k, masked)
                    return carry
                lax.fori_loop(0, n_chunks, body, 0)

        if needs_mask:
            @pl.when(t < tiles_total - 1)
            def _interior():
                run_tile(False)

            @pl.when(t == tiles_total - 1)
            def _boundary():
                run_tile(True)
        else:
            @pl.when(t < tiles_total)
            def _all_tiles():
                run_tile(False)

        @pl.when(i == pl.num_programs(1) - 1)
        def _finalize():
            total = jnp.sum(acc_ref[...], axis=-1, keepdims=True)      # (1, 1)
            o_ref[...] = jnp.broadcast_to(total.reshape(1, 1, 1), (1, 1, _LANES))

    yp_bytes = m_use * _LANES * jnp.dtype(y_pred.dtype).itemsize
    cost = pl.CostEstimate(
        flops=2 * m_use * _LANES * g + 6 * m_use * g,
        transcendentals=0,
        bytes_accessed=int(yp_bytes + m_use * g * itemsize
                           + _LANES * g * 4 + n_splits * _LANES * 4),
    )

    partials = pl.pallas_call(
        kernel,
        out_shape=jax.ShapeDtypeStruct((n_splits, 1, _LANES), jnp.float32),
        grid_spec=pltpu.PrefetchScalarGridSpec(
            num_scalar_prefetch=0,
            grid=(n_splits, tiles_per_split),
            in_specs=[
                pl.BlockSpec((tile_s, _LANES), lambda c, i: (col_index(c, i), 0)),
                pl.BlockSpec((tile_s, g), lambda c, i: (col_index(c, i), 0)),
                pl.BlockSpec((_LANES, g), lambda c, i: (0, 0)),
            ],
            out_specs=pl.BlockSpec((1, 1, _LANES), lambda c, i: (c, 0, 0)),
            scratch_shapes=[pltpu.VMEM((1, g), jnp.float32)],
        ),
        compiler_params=pltpu.CompilerParams(
            dimension_semantics=("parallel", "arbitrary"),
            vmem_limit_bytes=int(vmem_limit),
        ),
        cost_estimate=cost,
    )(yp2d, yt2d, seg)

    # Tiny host-side epilogue: combine per-split partials, scale by 1/(B*F).
    return jnp.sum(partials[:, 0, 0]) * (1.0 / float(R))


def mse_loss_ref(y_pred, y_true):
    """Pure-JAX reference mirroring the torch code (non-masked branch)."""
    y_pred_sum = jnp.sum(y_pred, axis=-1)
    diff = jnp.abs(y_pred_sum) - jnp.abs(y_true.reshape(y_pred_sum.shape))
    return jnp.mean(diff ** 2)


if __name__ == "__main__":
    # Small shapes consistent with the module: nfft=30 -> F = nfft//2 + 1 = 16.
    B, F, N = 2, 16, 8

    key = jax.random.PRNGKey(0)
    k1, k2 = jax.random.split(key)
    y_pred = jax.random.normal(k1, (B, F, N), dtype=jnp.float32)
    y_true = jax.random.normal(k2, (B, F, 1), dtype=jnp.float32)

    loss = mse_loss_pallas(y_pred, y_true)
    loss = jax.block_until_ready(loss)

    ref = mse_loss_ref(y_pred, y_true)
    assert jnp.allclose(loss, ref, rtol=1e-4, atol=1e-5), (loss, ref)

    print("KERNEL_OK")
</pallas_src>

<mosaic_0001>
module attributes {stable_mosaic.version = 11 : i64} {
  func.func @kernel(%arg0: i32, %arg1: i32, %arg2: memref<8x128xf32, #tpu.memory_space<vmem>>, %arg3: memref<8x16xf32, #tpu.memory_space<vmem>>, %arg4: memref<128x16xf32, #tpu.memory_space<vmem>>, %arg5: memref<1x1x128xf32, #tpu.memory_space<vmem>>, %arg6: memref<1x16xf32, #tpu.memory_space<vmem>>) attributes {dimension_semantics = [#tpu.dimension_semantics<parallel>, #tpu.dimension_semantics<arbitrary>], iteration_bounds = array<i64: 2, 1>, scalar_prefetch = 0 : i64, scratch_operands = 1 : i64, tpu.core_type = #tpu.core_type<tc>, window_params = [{transform_indices = @transform_0, window_bounds = array<i64: 8, 128>}, {transform_indices = @transform_1, window_bounds = array<i64: 8, 16>}, {pipeline_mode = #tpu.pipeline_mode<synchronous>, transform_indices = @transform_2, window_bounds = array<i64: 128, 16>}, {transform_indices = @transform_3, window_bounds = array<i64: 1, 1, 128>}]} {
    %c1_i32 = arith.constant 1 : i32
    %0 = arith.muli %arg0, %c1_i32 : i32
    %1 = arith.addi %0, %arg1 : i32
    %c0_i32 = arith.constant 0 : i32
    %2 = arith.cmpi eq, %arg1, %c0_i32 : i32
    %3 = arith.extui %2 : i1 to i32
    %c0_i32_0 = arith.constant 0 : i32
    %4 = arith.cmpi ne, %3, %c0_i32_0 : i32
    scf.if %4 {
      %cst = arith.constant 0.000000e+00 : f32
      %12 = vector.broadcast %cst : f32 to vector<1x16xf32>
      %c0_6 = arith.constant 0 : index
      %c0_7 = arith.constant 0 : index
      %13 = vector.load %arg6[%c0_6, %c0_7] : memref<1x16xf32, #tpu.memory_space<vmem>>, vector<1x16xf32>
      tpu.vector_store %arg6[%c0_6, %c0_7], %12 {strides = array<i32>} : memref<1x16xf32, #tpu.memory_space<vmem>>, vector<1x16xf32>,
    } else {
    }
    %c0 = arith.constant 0 : index
    %c0_1 = arith.constant 0 : index
    %5 = vector.load %arg4[%c0, %c0_1] : memref<128x16xf32, #tpu.memory_space<vmem>>, vector<128x16xf32>
    %c1_i32_2 = arith.constant 1 : i32
    %6 = arith.cmpi slt, %1, %c1_i32_2 : i32
    %7 = arith.extui %6 : i1 to i32
    %c0_i32_3 = arith.constant 0 : i32
    %8 = arith.cmpi ne, %7, %c0_i32_3 : i32
    scf.if %8 {
      %c0_6 = arith.constant 0 : index
      %c0_7 = arith.constant 0 : index
      %12 = vector.load %arg2[%c0_6, %c0_7] : memref<8x128xf32, #tpu.memory_space<vmem>>, vector<8x128xf32>
      %c0_8 = arith.constant 0 : index
      %c0_9 = arith.constant 0 : index
      %13 = vector.load %arg3[%c0_8, %c0_9] : memref<8x16xf32, #tpu.memory_space<vmem>>, vector<8x16xf32>
      %cst = arith.constant dense<0.000000e+00> : vector<8x16xf32>
      %14 = tpu.matmul %12, %5, %cst {dimension_numbers = #tpu.dot_dimension_numbers<[1], [0], [0], [1], [0, 0, 1, 1], [], []>, precision = #tpu.contract_precision<fp32>} : vector<8x128xf32>, vector<128x16xf32>, vector<8x16xf32> -> vector<8x16xf32>
      %15 = math.absf %14 : vector<8x16xf32>
      %16 = math.absf %13 : vector<8x16xf32>
      %17 = arith.subf %15, %16 : vector<8x16xf32>
      %18 = arith.mulf %17, %17 : vector<8x16xf32>
      %c0_10 = arith.constant 0 : index
      %c0_11 = arith.constant 0 : index
      %19 = vector.load %arg6[%c0_10, %c0_11] : memref<1x16xf32, #tpu.memory_space<vmem>>, vector<1x16xf32>
      %cst_12 = arith.constant dense<0.000000e+00> : vector<16xf32>
      %20 = vector.multi_reduction <add>, %18, %cst_12 [0] : vector<8x16xf32> to vector<16xf32>
      %21 = vector.shape_cast %20 : vector<16xf32> to vector<1x16xf32>
      %22 = arith.addf %19, %21 : vector<1x16xf32>
      %c0_13 = arith.constant 0 : index
      %c0_14 = arith.constant 0 : index
      %23 = vector.load %arg6[%c0_13, %c0_14] : memref<1x16xf32, #tpu.memory_space<vmem>>, vector<1x16xf32>
      tpu.vector_store %arg6[%c0_13, %c0_14], %22 {strides = array<i32>} : memref<1x16xf32, #tpu.memory_space<vmem>>, vector<1x16xf32>,
    } else {
    }
    %c0_i32_4 = arith.constant 0 : i32
    %9 = arith.cmpi eq, %arg1, %c0_i32_4 : i32
    %10 = arith.extui %9 : i1 to i32
    %c0_i32_5 = arith.constant 0 : i32
    %11 = arith.cmpi ne, %10, %c0_i32_5 : i32
    scf.if %11 {
      %c0_6 = arith.constant 0 : index
      %c0_7 = arith.constant 0 : index
      %12 = vector.load %arg6[%c0_6, %c0_7] : memref<1x16xf32, #tpu.memory_space<vmem>>, vector<1x16xf32>
      %cst = arith.constant dense<0.000000e+00> : vector<1xf32>
      %13 = vector.multi_reduction <add>, %12, %cst [1] : vector<1x16xf32> to vector<1xf32>
      %14 = vector.shape_cast %13 : vector<1xf32> to vector<1x1xf32>
      %15 = vector.shape_cast %14 : vector<1x1xf32> to vector<1x1x1xf32>
      %16 = vector.shape_cast %15 : vector<1x1x1xf32> to vector<1x1x1xf32>
      %17 = vector.broadcast %16 : vector<1x1x1xf32> to vector<1x1x128xf32>
      %c0_8 = arith.constant 0 : index
      %c0_9 = arith.constant 0 : index
      %c0_10 = arith.constant 0 : index
      %18 = vector.load %arg5[%c0_8, %c0_9, %c0_10] : memref<1x1x128xf32, #tpu.memory_space<vmem>>, vector<1x1x128xf32>
      tpu.vector_store %arg5[%c0_8, %c0_9, %c0_10], %17 {strides = array<i32>} : memref<1x1x128xf32, #tpu.memory_space<vmem>>, vector<1x1x128xf32>,
    } else {
    }
    return
  }
  func.func @transform_0(%arg0: i32, %arg1: i32) -> (i32, i32) {
    %c1_i32 = arith.constant 1 : i32
    %0 = arith.muli %arg0, %c1_i32 : i32
    %1 = arith.addi %0, %arg1 : i32
    %c0_i32 = arith.constant 0 : i32
    %2 = arith.minsi %1, %c0_i32 : i32
    %c0_i32_0 = arith.constant 0 : i32
    %c0_i32_1 = arith.constant 0 : i32
    return %2, %c0_i32_0 : i32, i32
  }
  func.func @transform_1(%arg0: i32, %arg1: i32) -> (i32, i32) {
    %c1_i32 = arith.constant 1 : i32
    %0 = arith.muli %arg0, %c1_i32 : i32
    %1 = arith.addi %0, %arg1 : i32
    %c0_i32 = arith.constant 0 : i32
    %2 = arith.minsi %1, %c0_i32 : i32
    %c0_i32_0 = arith.constant 0 : i32
    %c0_i32_1 = arith.constant 0 : i32
    return %2, %c0_i32_0 : i32, i32
  }
  func.func @transform_2(%arg0: i32, %arg1: i32) -> (i32, i32) {
    %c0_i32 = arith.constant 0 : i32
    %c0_i32_0 = arith.constant 0 : i32
    %c0_i32_1 = arith.constant 0 : i32
    return %c0_i32, %c0_i32_0 : i32, i32
  }
  func.func @transform_3(%arg0: i32, %arg1: i32) -> (i32, i32, i32) {
    %c0_i32 = arith.constant 0 : i32
    %c0_i32_0 = arith.constant 0 : i32
    %c0_i32_1 = arith.constant 0 : i32
    return %arg0, %c0_i32, %c0_i32_0 : i32, i32, i32
  }
}

</mosaic_0001>

<llo_original>
// kernel: tpu_custom_call.1
$region0: #{tpu_custom_call.1}
  #allocation0 [shape = 'u32[]', space=smem, size = 0x4, offset = 0x4, fixed_abs, tag = 'smem constant byte address 0x4 - core index']
  #allocation1 [shape = 'u32[144,128]{1,0:T(1,128)}', space=vmem, size = 0x12000, scoped, tag = 'internal scratch']
  #allocation2 [shape = 'f32[1,16]{1,0:T(1,128)}', space=vmem, size = 0x200, scoped, tag = 'scratch operand']
  %s0 = inlined_call_operand.vmem [shape: f32[8,128], index: 0, kind: input, shape index: {}]
  %s1 = inlined_call_operand.vmem [shape: f32[8,16], index: 1, kind: input, shape index: {}]
  %s2 = inlined_call_operand.vmem [shape: f32[128,16], index: 2, kind: input, shape index: {}]
  %s3 = inlined_call_operand.hbm [shape: f32[2,1,128], index: 3, kind: output, shape index: {}]
  %s4 = sld [smem:[#allocation0]]
  $region57: #{tpu_custom_call.1} parent=0
    _
  %s6 = ssub.s32 1, %s4
  %s7 = scalar_select 0, %s6, %s4
  $region1: #{tpu_custom_call.1} parent=0
    #allocation3 [shape = 'u8[1024]{0}', space=vmem, size = 0x400, scoped, tag = 'output window, operand 0']
    #allocation4 [shape = 's32[2]{0}', space=sflag, size = 0x8, scoped, tag = 'scoped memory for tpu_custom_call.1']
    %8 = vsyncpa [#allocation4], 0
    %s9 = scalar_lea.sflag [#allocation4], 1
    %10 = vsyncpa %s9, 0
    loop: start=0, step=1, limit=4
    $region2: #{tpu_custom_call.1} parent=1 // loop_pre_header
      _
    $region3: #{tpu_custom_call.1} parent=1 // loop_header
      %s12 = sphi 0, %s16
      %p13 = scmp.ge.s32.totalorder %s12, 4
      %s19 = sphi 0, %s31
      %s20 = sphi 0, %s27
      %s21 = sphi 0, %s19
      %s22 = sphi 0, %s20
      %s23 = sphi 0, %s21
      %s24 = sphi 0, %s22
      %s40 = sphi 0, %s42
      %s43 = sphi 0, %s40
      %s44 = sphi 0, %s43
      %s60 = sphi 0, %s44
      %s72 = sphi 0, %s74
      %s75 = sphi 0, %s72
      %s76 = sphi 0, %s75
      %s92 = sphi 0, %s76
      %s96 = sphi 0, %s96
      %s98 = sphi 0, %s96
      %s99 = sphi 0, %s98
      %s113 = sphi 0, %s99
      %s119 = sphi 0, %s121
      %s122 = sphi 0, %s119
      %s123 = sphi 0, %s122
      %s139 = sphi 0, %s123
    $region4: #{tpu_custom_call.1} parent=1 // loop_header_branch
      %15 = sbr.rel (%p13) target = $region8
    $region5: #{tpu_custom_call.1} parent=1 // loop_body
      %s17 = ssub.s32 %s12, 1
      %s18 = ssub.s32 %s12, 2
      %s25 = sadd.s32 1, %s20
      %p26 = scmp.ge.s32.totalorder %s25, 1
      %s27 = scalar_select %p26, 0, %s25
      %s28 = sadd.s32 1, %s19
      %s29 = scalar_select %p26, %s28, %s19
      %p30 = scmp.ge.s32.totalorder %s29, 2
      %s31 = scalar_select %p30, 0, %s29
      %s32 = sadd.s32 %s19, %s20
      %p33 = scmp.lt.s32.totalorder %s32, 0
      %s34 = scalar_select %p33, %s32, 0
      %s35 = sadd.s32 %s31, %s27
      %p36 = scmp.lt.s32.totalorder %s35, 0
      %s37 = scalar_select %p36, %s35, 0
      %s38 = ssub.s32 %s34, %s37
      %p39 = scmp.eq.s32.totalorder %s38, 0
      %s41 = sadd.s32 %s40, 1
      %s42 = scalar_select %p39, %s40, %s41
      %p45 = pneg %p39
      %p46 = scmp.eq.s32.totalorder %s12, 1
      %p47 = por %p45, %p46
      %p48 = scmp.ne.s32.totalorder %s40, %s43
      %p49 = scmp.eq.s32.totalorder %s12, 0
      %p50 = por %p48, %p49
      %p51 = scmp.ne.s32.totalorder %s40, %s43
      %p52 = scmp.eq.s32.totalorder %s17, 1
      %p53 = por %p51, %p52
      %p54 = scmp.ne.s32.totalorder %s43, %s44
      %p55 = scmp.eq.s32.totalorder %s17, 0
      %p56 = por %p54, %p55
      %p57 = scmp.ne.s32.totalorder %s43, %s44
      %p58 = scmp.eq.s32.totalorder %s18, 1
      %p59 = por %p57, %p58
      %p61 = scmp.ne.s32.totalorder %s44, %s60
      %p62 = scmp.eq.s32.totalorder %s18, 0
      %p63 = por %p61, %p62
      %s64 = sadd.s32 %s19, %s20
      %p65 = scmp.lt.s32.totalorder %s64, 0
      %s66 = scalar_select %p65, %s64, 0
      %s67 = sadd.s32 %s31, %s27
      %p68 = scmp.lt.s32.totalorder %s67, 0
      %s69 = scalar_select %p68, %s67, 0
      %s70 = ssub.s32 %s66, %s69
      %p71 = scmp.eq.s32.totalorder %s70, 0
      %s73 = sadd.s32 %s72, 1
      %s74 = scalar_select %p71, %s72, %s73
      %p77 = pneg %p71
      %p78 = scmp.eq.s32.totalorder %s12, 1
      %p79 = por %p77, %p78
      %p80 = scmp.ne.s32.totalorder %s72, %s75
      %p81 = scmp.eq.s32.totalorder %s12, 0
      %p82 = por %p80, %p81
      %p83 = scmp.ne.s32.totalorder %s72, %s75
      %p84 = scmp.eq.s32.totalorder %s17, 1
      %p85 = por %p83, %p84
      %p86 = scmp.ne.s32.totalorder %s75, %s76
      %p87 = scmp.eq.s32.totalorder %s17, 0
      %p88 = por %p86, %p87
      %p89 = scmp.ne.s32.totalorder %s75, %s76
      %p90 = scmp.eq.s32.totalorder %s18, 1
      %p91 = por %p89, %p90
      %p93 = scmp.ne.s32.totalorder %s76, %s92
      %p94 = scmp.eq.s32.totalorder %s18, 0
      %p95 = por %p93, %p94
      %s97 = sadd.s32 %s96, 1
      %p100 = scmp.eq.s32.totalorder %s12, 1
      %p101 = scmp.ne.s32.totalorder %s96, %s98
      %p102 = scmp.eq.s32.totalorder %s12, 0
      %p103 = por %p101, %p102
      %p104 = scmp.ne.s32.totalorder %s96, %s98
      %p105 = scmp.eq.s32.totalorder %s17, 1
      %p106 = por %p104, %p105
      %p107 = scmp.ne.s32.totalorder %s98, %s99
      %p108 = scmp.eq.s32.totalorder %s17, 0
      %p109 = por %p107, %p108
      %p110 = scmp.ne.s32.totalorder %s98, %s99
      %p111 = scmp.eq.s32.totalorder %s18, 1
      %p112 = por %p110, %p111
      %p114 = scmp.ne.s32.totalorder %s99, %s113
      %p115 = scmp.eq.s32.totalorder %s18, 0
      %p116 = por %p114, %p115
      %s117 = ssub.s32 %s19, %s31
      %p118 = scmp.eq.s32.totalorder %s117, 0
      %s120 = sadd.s32 %s119, 1
      %s121 = scalar_select %p118, %s119, %s120
      %p124 = pneg %p118
      %p125 = scmp.eq.s32.totalorder %s12, 1
      %p126 = por %p124, %p125
      %p127 = scmp.ne.s32.totalorder %s119, %s122
      %p128 = scmp.eq.s32.totalorder %s12, 0
      %p129 = por %p127, %p128
      %p130 = scmp.ne.s32.totalorder %s119, %s122
      %p131 = scmp.eq.s32.totalorder %s17, 1
      %p132 = por %p130, %p131
      %p133 = scmp.ne.s32.totalorder %s122, %s123
      %p134 = scmp.eq.s32.totalorder %s17, 0
      %p135 = por %p133, %p134
      %p136 = scmp.ne.s32.totalorder %s122, %s123
      %p137 = scmp.eq.s32.totalorder %s18, 1
      %p138 = por %p136, %p137
      %p140 = scmp.ne.s32.totalorder %s123, %s139
      %p141 = scmp.eq.s32.totalorder %s18, 0
      %p142 = por %p140, %p141
      %p143 = scmp.le.s32.totalorder 1, %s12
      %p144 = scmp.lt.s32.totalorder %s12, 3
      %p145 = pnand %p143, %p144
      %p146 = pneg %p145
      // Predicated region
      $region9: #{tpu_custom_call.1} parent=5 // pred_check
        _
      $region10: #{tpu_custom_call.1} parent=5 // pred_check_branch
        %148 = sbr.rel (%p145) target = $region12
      $region11: #{tpu_custom_call.1} parent=5 // pred_region
        %s149 = ssub.s32 %s12, 1
        // Predicated region
        $region13: #{tpu_custom_call.1} parent=11 // pred_check
          %p150 = pneg %p109
        $region14: #{tpu_custom_call.1} parent=11 // pred_check_branch
          %152 = sbr.rel (%p150) target = $region16
        $region15: #{tpu_custom_call.1} parent=11 // pred_region
          _
        $region16: #{tpu_custom_call.1} parent=11 // pred_fallthru
          _
      $region12: #{tpu_custom_call.1} parent=5 // pred_fallthru
        _
      %p153 = scmp.lt.s32.totalorder %s12, 2
      // Predicated region
      $region17: #{tpu_custom_call.1} parent=5 // pred_check
        %p154 = pneg %p153
      $region18: #{tpu_custom_call.1} parent=5 // pred_check_branch
        %156 = sbr.rel (%p154) target = $region20
      $region19: #{tpu_custom_call.1} parent=5 // pred_region
        // Predicated region
        $region21: #{tpu_custom_call.1} parent=19 // pred_check
          %p157 = pneg %p50
        $region22: #{tpu_custom_call.1} parent=19 // pred_check_branch
          %159 = sbr.rel (%p157) target = $region24
        $region23: #{tpu_custom_call.1} parent=19 // pred_region
          %s160 = sadd.s32 %s19, %s20
          %p161 = scmp.lt.s32.totalorder %s160, 0
          %s162 = scalar_select %p161, %s160, 0
          %p163 = scmp.lt.s32.totalorder %s162, 0
          %s164 = scalar_select %p163, %s162, 0
          %s165 = smul.addr %s164, 8
          %s166 = scalar_lea.vmem %s0, %s165
          %s167 = sadd.s32 %s19, %s20
          %p168 = scmp.lt.s32.totalorder %s167, 0
          %s169 = scalar_select %p168, %s167, 0
        $region24: #{tpu_custom_call.1} parent=19 // pred_fallthru
          _
        // Predicated region
        $region25: #{tpu_custom_call.1} parent=19 // pred_check
          %p170 = pneg %p82
        $region26: #{tpu_custom_call.1} parent=19 // pred_check_branch
          %172 = sbr.rel (%p170) target = $region28
        $region27: #{tpu_custom_call.1} parent=19 // pred_region
          %s173 = sadd.s32 %s19, %s20
          %p174 = scmp.lt.s32.totalorder %s173, 0
          %s175 = scalar_select %p174, %s173, 0
          %p176 = scmp.lt.s32.totalorder %s175, 0
          %s177 = scalar_select %p176, %s175, 0
          %s178 = smul.addr %s177, 8
          %s179 = scalar_lea.vmem %s1, %s178
          %s180 = sadd.s32 %s19, %s20
          %p181 = scmp.lt.s32.totalorder %s180, 0
          %s182 = scalar_select %p181, %s180, 0
        $region28: #{tpu_custom_call.1} parent=19 // pred_fallthru
          _
      $region20: #{tpu_custom_call.1} parent=5 // pred_fallthru
        _
      %p183 = scmp.le.s32.totalorder 1, %s12
      %p184 = scmp.lt.s32.totalorder %s12, 3
      %p185 = pnand %p183, %p184
      %p186 = pneg %p185
      // Predicated region
      $region29: #{tpu_custom_call.1} parent=5 // pred_check
        _
      $region30: #{tpu_custom_call.1} parent=5 // pred_check_branch
        %188 = sbr.rel (%p185) target = $region32
      $region31: #{tpu_custom_call.1} parent=5 // pred_region
        %s189 = ssub.s32 %s12, 1
        %s190 = sadd.s32 %s21, %s22
        %p191 = scmp.lt.s32.totalorder %s190, 0
        %s192 = scalar_select %p191, %s190, 0
        %p193 = scmp.lt.s32.totalorder %s192, 0
        %s194 = scalar_select %p193, %s192, 0
        %s195 = smul.addr %s194, 8
        %s196 = scalar_lea.vmem %s0, %s195
        %p197 = pneg %p56
        %p198 = pneg %p53
        %s199 = sadd.s32 %s21, %s22
        %p200 = scmp.lt.s32.totalorder %s199, 0
        %s201 = scalar_select %p200, %s199, 0
        %p202 = scmp.lt.s32.totalorder %s201, 0
        %s203 = scalar_select %p202, %s201, 0
        %s204 = smul.addr %s203, 8
        %s205 = scalar_lea.vmem %s1, %s204
        %p206 = pneg %p88
        %p207 = pneg %p85
        %p208 = pneg %p109
        %p209 = pneg %p106
        %p210 = pneg %p135
        %p211 = pneg %p132
        %s212 = sand.u32 %s122, 1
        %s213 = scalar_lea.sflag [#allocation4], %s212
        %s214 = sand.u32 %s122, 1
        %s215 = scalar_lea.vmem [#allocation3], %s214
        %s216 = sadd.s32 %s21, %s22
        %p217 = scmp.lt.s32.totalorder %s216, 0
        %s218 = scalar_select %p217, %s216, 0
        %p219 = scmp.lt.s32.totalorder %s218, 0
        %s220 = scalar_select %p219, %s218, 0
        %s221 = smul.addr %s220, 8
        %s222 = scalar_lea.vmem %s0, %s221
        %s223 = sadd.s32 %s21, %s22
        %p224 = scmp.lt.s32.totalorder %s223, 0
        %s225 = scalar_select %p224, %s223, 0
        %s226 = sadd.s32 %s21, %s22
        %p227 = scmp.lt.s32.totalorder %s226, 0
        %s228 = scalar_select %p227, %s226, 0
        %p229 = scmp.lt.s32.totalorder %s228, 0
        %s230 = scalar_select %p229, %s228, 0
        %s231 = smul.addr %s230, 8
        %s232 = scalar_lea.vmem %s1, %s231
        %s233 = sadd.s32 %s21, %s22
        %p234 = scmp.lt.s32.totalorder %s233, 0
        %s235 = scalar_select %p234, %s233, 0
        %s236 = sadd.s32 %s21, %s22
        %p237 = scmp.eq.s32.totalorder %s22, 0
        // Predicated region
        $region33: #{tpu_custom_call.1} parent=31 // pred_check
          %p238 = pneg %p237
        $region34: #{tpu_custom_call.1} parent=31 // pred_check_branch
          %240 = sbr.rel (%p238) target = $region36
        $region35: #{tpu_custom_call.1} parent=31 // pred_region
          %vm241 = vcmask 122880
          %242 = vst.msk [vmem:[#allocation2] sm:$0x1] %vm241, 0.0
        $region36: #{tpu_custom_call.1} parent=31 // pred_fallthru
          _
        %v243 = vld [vmem:[%s2] sm:$0xff]
        %v244 = vld [vmem:[%s2 + $0x8] sm:$0xff]
        %v245 = vld [vmem:[%s2 + $0x10] sm:$0xff]
        %v246 = vld [vmem:[%s2 + $0x18] sm:$0xff]
        %v247 = vld [vmem:[%s2 + $0x20] sm:$0xff]
        %v248 = vld [vmem:[%s2 + $0x28] sm:$0xff]
        %v249 = vld [vmem:[%s2 + $0x30] sm:$0xff]
        %v250 = vld [vmem:[%s2 + $0x38] sm:$0xff]
        %v251 = vld [vmem:[%s2 + $0x40] sm:$0xff]
        %v252 = vld [vmem:[%s2 + $0x48] sm:$0xff]
        %v253 = vld [vmem:[%s2 + $0x50] sm:$0xff]
        %v254 = vld [vmem:[%s2 + $0x58] sm:$0xff]
        %v255 = vld [vmem:[%s2 + $0x60] sm:$0xff]
        %v256 = vld [vmem:[%s2 + $0x68] sm:$0xff]
        %v257 = vld [vmem:[%s2 + $0x70] sm:$0xff]
        %v258 = vld [vmem:[%s2 + $0x78] sm:$0xff]
        %p259 = scmp.lt.s32.totalorder %s236, 1
        // Predicated region
        $region37: #{tpu_custom_call.1} parent=31 // pred_check
          %p260 = pneg %p259
        $region38: #{tpu_custom_call.1} parent=31 // pred_check_branch
          %262 = sbr.rel (%p260) target = $region40
        $region39: #{tpu_custom_call.1} parent=31 // pred_region
          %v263 = vld [vmem:[%s222] sm:$0xff]
          %v264 = vld [vmem:[%s232] sm:$0xff]
          %265 = vmatprep.subr.mxu0 0.0
          %v266 = vand.u32 %v258, 4294901760
          %267 = vmatpush1.msra.mxu0 %v266
          %268 = vmatprep.subr.mxu0 0.0
          %v269 = vand.u32 %v257, 4294901760
          %270 = vmatpush1.msra.mxu0 %v269
          %271 = vmatprep.subr.mxu0 0.0
          %v272 = vand.u32 %v256, 4294901760
          %273 = vmatpush1.msra.mxu0 %v272
          %274 = vmatprep.subr.mxu0 0.0
          %v275 = vand.u32 %v255, 4294901760
          %276 = vmatpush1.msra.mxu0 %v275
          %277 = vmatprep.subr.mxu0 0.0
          %v278 = vand.u32 %v254, 4294901760
          %279 = vmatpush1.msra.mxu0 %v278
          %280 = vmatprep.subr.mxu0 0.0
          %v281 = vand.u32 %v253, 4294901760
          %282 = vmatpush1.msra.mxu0 %v281
          %283 = vmatprep.subr.mxu0 0.0
          %v284 = vand.u32 %v252, 4294901760
          %285 = vmatpush1.msra.mxu0 %v284
          %286 = vmatprep.subr.mxu0 0.0
          %v287 = vand.u32 %v251, 4294901760
          %288 = vmatpush1.msra.mxu0 %v287
          %289 = vmatprep.subr.mxu0 0.0
          %v290 = vand.u32 %v250, 4294901760
          %291 = vmatpush1.msra.mxu0 %v290
          %292 = vmatprep.subr.mxu0 0.0
          %v293 = vand.u32 %v249, 4294901760
          %294 = vmatpush1.msra.mxu0 %v293
          %295 = vmatprep.subr.mxu0 0.0
          %v296 = vand.u32 %v248, 4294901760
          %297 = vmatpush1.msra.mxu0 %v296
          %298 = vmatprep.subr.mxu0 0.0
          %v299 = vand.u32 %v247, 4294901760
          %300 = vmatpush1.msra.mxu0 %v299
          %301 = vmatprep.subr.mxu0 0.0
          %v302 = vand.u32 %v246, 4294901760
          %303 = vmatpush1.msra.mxu0 %v302
          %304 = vmatprep.subr.mxu0 0.0
          %v305 = vand.u32 %v245, 4294901760
          %306 = vmatpush1.msra.mxu0 %v305
          %307 = vmatprep.subr.mxu0 0.0
          %v308 = vand.u32 %v244, 4294901760
          %309 = vmatpush1.msra.mxu0 %v308
          %310 = vmatprep.subr.mxu0 0.0
          %v311 = vand.u32 %v243, 4294901760
          %312 = vmatpush1.msra.mxu0 %v311
          %313 = vmatprep.subr.mxu0 0.0
          %314 = vmatpush2.msra.mxu0 0.0
          %315 = vmatprep.subr.mxu0 0.0
          %316 = vmatpush2.msra.mxu0 0.0
          %317 = vmatprep.subr.mxu0 0.0
          %318 = vmatpush2.msra.mxu0 0.0
          %319 = vmatprep.subr.mxu0 0.0
          %320 = vmatpush2.msra.mxu0 0.0
          %321 = vmatprep.subr.mxu0 0.0
          %322 = vmatpush2.msra.mxu0 0.0
          %323 = vmatprep.subr.mxu0 0.0
          %324 = vmatpush2.msra.mxu0 0.0
          %325 = vmatprep.subr.mxu0 0.0
          %326 = vmatpush2.msra.mxu0 0.0
          %327 = vmatprep.subr.mxu0 0.0
          %328 = vmatpush2.msra.mxu0 0.0
          %329 = vmatprep.subr.mxu0 0.0
          %330 = vmatpush2.msra.mxu0 0.0
          %331 = vmatprep.subr.mxu0 0.0
          %332 = vmatpush2.msra.mxu0 0.0
          %333 = vmatprep.subr.mxu0 0.0
          %334 = vmatpush2.msra.mxu0 0.0
          %335 = vmatprep.subr.mxu0 0.0
          %336 = vmatpush2.msra.mxu0 0.0
          %337 = vmatprep.subr.mxu0 0.0
          %338 = vmatpush2.msra.mxu0 0.0
          %339 = vmatprep.subr.mxu0 0.0
          %340 = vmatpush2.msra.mxu0 0.0
          %341 = vmatprep.subr.mxu0 0.0
          %342 = vmatpush2.msra.mxu0 0.0
          %343 = vmatprep.subr.mxu0 0.0
          %344 = vmatpush2.msra.mxu0 0.0
          %345 = vmatprep.mubr.f32.mxu0 0.0
          %v346 = vand.u32 %v263, 4294901760
          %v347 = vsub.f32 %v263, %v346
          %v348 = vand.u32 %v347, 4294901760
          %v349 = vsub.f32 %v347, %v348
          %v350 = vand.u32 %v349, 4294901760
          %351 = vmatmul.mubr.f32.gmra.mxu0 %v350
          %v352 = vpop.f32.mrf.mxu0
          %v353 = vadd.f32 0.0, %v352
          %v354 = vpop.f32.mrf.mxu0
          %355 = vdwg.mxu0
          %356 = vmatprep.subr.mxu0 0.0
          %v357 = vand.u32 %v258, 4294901760
          %v358 = vsub.f32 %v258, %v357
          %v359 = vand.u32 %v358, 4294901760
          %v360 = vsub.f32 %v358, %v359
          %v361 = vand.u32 %v360, 4294901760
          %362 = vmatpush1.msra.mxu0 %v361
          %363 = vmatprep.subr.mxu0 0.0
          %v364 = vand.u32 %v257, 4294901760
          %v365 = vsub.f32 %v257, %v364
          %v366 = vand.u32 %v365, 4294901760
          %v367 = vsub.f32 %v365, %v366
          %v368 = vand.u32 %v367, 4294901760
          %369 = vmatpush1.msra.mxu0 %v368
          %370 = vmatprep.subr.mxu0 0.0
          %v371 = vand.u32 %v256, 4294901760
          %v372 = vsub.f32 %v256, %v371
          %v373 = vand.u32 %v372, 4294901760
          %v374 = vsub.f32 %v372, %v373
          %v375 = vand.u32 %v374, 4294901760
          %376 = vmatpush1.msra.mxu0 %v375
          %377 = vmatprep.subr.mxu0 0.0
          %v378 = vand.u32 %v255, 4294901760
          %v379 = vsub.f32 %v255, %v378
          %v380 = vand.u32 %v379, 4294901760
          %v381 = vsub.f32 %v379, %v380
          %v382 = vand.u32 %v381, 4294901760
          %383 = vmatpush1.msra.mxu0 %v382
          %384 = vmatprep.subr.mxu0 0.0
          %v385 = vand.u32 %v254, 4294901760
          %v386 = vsub.f32 %v254, %v385
          %v387 = vand.u32 %v386, 4294901760
          %v388 = vsub.f32 %v386, %v387
          %v389 = vand.u32 %v388, 4294901760
          %390 = vmatpush1.msra.mxu0 %v389
          %391 = vmatprep.subr.mxu0 0.0
          %v392 = vand.u32 %v253, 4294901760
          %v393 = vsub.f32 %v253, %v392
          %v394 = vand.u32 %v393, 4294901760
          %v395 = vsub.f32 %v393, %v394
          %v396 = vand.u32 %v395, 4294901760
          %397 = vmatpush1.msra.mxu0 %v396
          %398 = vmatprep.subr.mxu0 0.0
          %v399 = vand.u32 %v252, 4294901760
          %v400 = vsub.f32 %v252, %v399
          %v401 = vand.u32 %v400, 4294901760
          %v402 = vsub.f32 %v400, %v401
          %v403 = vand.u32 %v402, 4294901760
          %404 = vmatpush1.msra.mxu0 %v403
          %405 = vmatprep.subr.mxu0 0.0
          %v406 = vand.u32 %v251, 4294901760
          %v407 = vsub.f32 %v251, %v406
          %v408 = vand.u32 %v407, 4294901760
          %v409 = vsub.f32 %v407, %v408
          %v410 = vand.u32 %v409, 4294901760
          %411 = vmatpush1.msra.mxu0 %v410
          %412 = vmatprep.subr.mxu0 0.0
          %v413 = vand.u32 %v250, 4294901760
          %v414 = vsub.f32 %v250, %v413
          %v415 = vand.u32 %v414, 4294901760
          %v416 = vsub.f32 %v414, %v415
          %v417 = vand.u32 %v416, 4294901760
          %418 = vmatpush1.msra.mxu0 %v417
          %419 = vmatprep.subr.mxu0 0.0
          %v420 = vand.u32 %v249, 4294901760
          %v421 = vsub.f32 %v249, %v420
          %v422 = vand.u32 %v421, 4294901760
          %v423 = vsub.f32 %v421, %v422
          %v424 = vand.u32 %v423, 4294901760
          %425 = vmatpush1.msra.mxu0 %v424
          %426 = vmatprep.subr.mxu0 0.0
          %v427 = vand.u32 %v248, 4294901760
          %v428 = vsub.f32 %v248, %v427
          %v429 = vand.u32 %v428, 4294901760
          %v430 = vsub.f32 %v428, %v429
          %v431 = vand.u32 %v430, 4294901760
          %432 = vmatpush1.msra.mxu0 %v431
          %433 = vmatprep.subr.mxu0 0.0
          %v434 = vand.u32 %v247, 4294901760
          %v435 = vsub.f32 %v247, %v434
          %v436 = vand.u32 %v435, 4294901760
          %v437 = vsub.f32 %v435, %v436
          %v438 = vand.u32 %v437, 4294901760
          %439 = vmatpush1.msra.mxu0 %v438
          %440 = vmatprep.subr.mxu0 0.0
          %v441 = vand.u32 %v246, 4294901760
          %v442 = vsub.f32 %v246, %v441
          %v443 = vand.u32 %v442, 4294901760
          %v444 = vsub.f32 %v442, %v443
          %v445 = vand.u32 %v444, 4294901760
          %446 = vmatpush1.msra.mxu0 %v445
          %447 = vmatprep.subr.mxu0 0.0
          %v448 = vand.u32 %v245, 4294901760
          %v449 = vsub.f32 %v245, %v448
          %v450 = vand.u32 %v449, 4294901760
          %v451 = vsub.f32 %v449, %v450
          %v452 = vand.u32 %v451, 4294901760
          %453 = vmatpush1.msra.mxu0 %v452
          %454 = vmatprep.subr.mxu0 0.0
          %v455 = vand.u32 %v244, 4294901760
          %v456 = vsub.f32 %v244, %v455
          %v457 = vand.u32 %v456, 4294901760
          %v458 = vsub.f32 %v456, %v457
          %v459 = vand.u32 %v458, 4294901760
          %460 = vmatpush1.msra.mxu0 %v459
          %461 = vmatprep.subr.mxu0 0.0
          %v462 = vand.u32 %v243, 4294901760
          %v463 = vsub.f32 %v243, %v462
          %v464 = vand.u32 %v463, 4294901760
          %v465 = vsub.f32 %v463, %v464
          %v466 = vand.u32 %v465, 4294901760
          %467 = vmatpush1.msra.mxu0 %v466
          %468 = vmatprep.subr.mxu0 0.0
          %469 = vmatpush2.msra.mxu0 0.0
          %470 = vmatprep.subr.mxu0 0.0
          %471 = vmatpush2.msra.mxu0 0.0
          %472 = vmatprep.subr.mxu0 0.0
          %473 = vmatpush2.msra.mxu0 0.0
          %474 = vmatprep.subr.mxu0 0.0
          %475 = vmatpush2.msra.mxu0 0.0
          %476 = vmatprep.subr.mxu0 0.0
          %477 = vmatpush2.msra.mxu0 0.0
          %478 = vmatprep.subr.mxu0 0.0
          %479 = vmatpush2.msra.mxu0 0.0
          %480 = vmatprep.subr.mxu0 0.0
          %481 = vmatpush2.msra.mxu0 0.0
          %482 = vmatprep.subr.mxu0 0.0
          %483 = vmatpush2.msra.mxu0 0.0
          %484 = vmatprep.subr.mxu0 0.0
          %485 = vmatpush2.msra.mxu0 0.0
          %486 = vmatprep.subr.mxu0 0.0
          %487 = vmatpush2.msra.mxu0 0.0
          %488 = vmatprep.subr.mxu0 0.0
          %489 = vmatpush2.msra.mxu0 0.0
          %490 = vmatprep.subr.mxu0 0.0
          %491 = vmatpush2.msra.mxu0 0.0
          %492 = vmatprep.subr.mxu0 0.0
          %493 = vmatpush2.msra.mxu0 0.0
          %494 = vmatprep.subr.mxu0 0.0
          %495 = vmatpush2.msra.mxu0 0.0
          %496 = vmatprep.subr.mxu0 0.0
          %497 = vmatpush2.msra.mxu0 0.0
          %498 = vmatprep.subr.mxu0 0.0
          %499 = vmatpush2.msra.mxu0 0.0
          %500 = vmatprep.mubr.f32.mxu0 0.0
          %v501 = vand.u32 %v263, 4294901760
          %502 = vmatmul.mubr.f32.gmra.mxu0 %v501
          %v503 = vpop.f32.mrf.mxu0
          %v504 = vadd.f32 %v353, %v503
          %v505 = vpop.f32.mrf.mxu0
          %506 = vdwg.mxu0
          %507 = vmatprep.subr.mxu0 0.0
          %v508 = vand.u32 %v258, 4294901760
          %v509 = vsub.f32 %v258, %v508
          %510 = vmatpush1.msra.mxu0 %v509
          %511 = vmatprep.subr.mxu0 0.0
          %v512 = vand.u32 %v257, 4294901760
          %v513 = vsub.f32 %v257, %v512
          %514 = vmatpush1.msra.mxu0 %v513
          %515 = vmatprep.subr.mxu0 0.0
          %v516 = vand.u32 %v256, 4294901760
          %v517 = vsub.f32 %v256, %v516
          %518 = vmatpush1.msra.mxu0 %v517
          %519 = vmatprep.subr.mxu0 0.0
          %v520 = vand.u32 %v255, 4294901760
          %v521 = vsub.f32 %v255, %v520
          %522 = vmatpush1.msra.mxu0 %v521
          %523 = vmatprep.subr.mxu0 0.0
          %v524 = vand.u32 %v254, 4294901760
          %v525 = vsub.f32 %v254, %v524
          %526 = vmatpush1.msra.mxu0 %v525
          %527 = vmatprep.subr.mxu0 0.0
          %v528 = vand.u32 %v253, 4294901760
          %v529 = vsub.f32 %v253, %v528
          %530 = vmatpush1.msra.mxu0 %v529
          %531 = vmatprep.subr.mxu0 0.0
          %v532 = vand.u32 %v252, 4294901760
          %v533 = vsub.f32 %v252, %v532
          %534 = vmatpush1.msra.mxu0 %v533
          %535 = vmatprep.subr.mxu0 0.0
          %v536 = vand.u32 %v251, 4294901760
          %v537 = vsub.f32 %v251, %v536
          %538 = vmatpush1.msra.mxu0 %v537
          %539 = vmatprep.subr.mxu0 0.0
          %v540 = vand.u32 %v250, 4294901760
          %v541 = vsub.f32 %v250, %v540
          %542 = vmatpush1.msra.mxu0 %v541
          %543 = vmatprep.subr.mxu0 0.0
          %v544 = vand.u32 %v249, 4294901760
          %v545 = vsub.f32 %v249, %v544
          %546 = vmatpush1.msra.mxu0 %v545
          %547 = vmatprep.subr.mxu0 0.0
          %v548 = vand.u32 %v248, 4294901760
          %v549 = vsub.f32 %v248, %v548
          %550 = vmatpush1.msra.mxu0 %v549
          %551 = vmatprep.subr.mxu0 0.0
          %v552 = vand.u32 %v247, 4294901760
          %v553 = vsub.f32 %v247, %v552
          %554 = vmatpush1.msra.mxu0 %v553
          %555 = vmatprep.subr.mxu0 0.0
          %v556 = vand.u32 %v246, 4294901760
          %v557 = vsub.f32 %v246, %v556
          %558 = vmatpush1.msra.mxu0 %v557
          %559 = vmatprep.subr.mxu0 0.0
          %v560 = vand.u32 %v245, 4294901760
          %v561 = vsub.f32 %v245, %v560
          %562 = vmatpush1.msra.mxu0 %v561
          %563 = vmatprep.subr.mxu0 0.0
          %v564 = vand.u32 %v244, 4294901760
          %v565 = vsub.f32 %v244, %v564
          %566 = vmatpush1.msra.mxu0 %v565
          %567 = vmatprep.subr.mxu0 0.0
          %v568 = vand.u32 %v243, 4294901760
          %v569 = vsub.f32 %v243, %v568
          %570 = vmatpush1.msra.mxu0 %v569
          %571 = vmatprep.subr.mxu0 0.0
          %572 = vmatpush2.msra.mxu0 0.0
          %573 = vmatprep.subr.mxu0 0.0
          %574 = vmatpush2.msra.mxu0 0.0
          %575 = vmatprep.subr.mxu0 0.0
          %576 = vmatpush2.msra.mxu0 0.0
          %577 = vmatprep.subr.mxu0 0.0
          %578 = vmatpush2.msra.mxu0 0.0
          %579 = vmatprep.subr.mxu0 0.0
          %580 = vmatpush2.msra.mxu0 0.0
          %581 = vmatprep.subr.mxu0 0.0
          %582 = vmatpush2.msra.mxu0 0.0
          %583 = vmatprep.subr.mxu0 0.0
          %584 = vmatpush2.msra.mxu0 0.0
          %585 = vmatprep.subr.mxu0 0.0
          %586 = vmatpush2.msra.mxu0 0.0
          %587 = vmatprep.subr.mxu0 0.0
          %588 = vmatpush2.msra.mxu0 0.0
          %589 = vmatprep.subr.mxu0 0.0
          %590 = vmatpush2.msra.mxu0 0.0
          %591 = vmatprep.subr.mxu0 0.0
          %592 = vmatpush2.msra.mxu0 0.0
          %593 = vmatprep.subr.mxu0 0.0
          %594 = vmatpush2.msra.mxu0 0.0
          %595 = vmatprep.subr.mxu0 0.0
          %596 = vmatpush2.msra.mxu0 0.0
          %597 = vmatprep.subr.mxu0 0.0
          %598 = vmatpush2.msra.mxu0 0.0
          %599 = vmatprep.subr.mxu0 0.0
          %600 = vmatpush2.msra.mxu0 0.0
          %601 = vmatprep.subr.mxu0 0.0
          %602 = vmatpush2.msra.mxu0 0.0
          %603 = vmatprep.mubr.f32.mxu0 0.0
          %v604 = vand.u32 %v263, 4294901760
          %v605 = vsub.f32 %v263, %v604
          %606 = vmatmul.mubr.f32.gmra.mxu0 %v605
          %v607 = vpop.f32.mrf.mxu0
          %v608 = vadd.f32 %v504, %v607
          %v609 = vpop.f32.mrf.mxu0
          %610 = vdwg.mxu0
          %611 = vmatprep.subr.mxu0 0.0
          %v612 = vand.u32 %v258, 4294901760
          %613 = vmatpush1.msra.mxu0 %v612
          %614 = vmatprep.subr.mxu0 0.0
          %v615 = vand.u32 %v257, 4294901760
          %616 = vmatpush1.msra.mxu0 %v615
          %617 = vmatprep.subr.mxu0 0.0
          %v618 = vand.u32 %v256, 4294901760
          %619 = vmatpush1.msra.mxu0 %v618
          %620 = vmatprep.subr.mxu0 0.0
          %v621 = vand.u32 %v255, 4294901760
          %622 = vmatpush1.msra.mxu0 %v621
          %623 = vmatprep.subr.mxu0 0.0
          %v624 = vand.u32 %v254, 4294901760
          %625 = vmatpush1.msra.mxu0 %v624
          %626 = vmatprep.subr.mxu0 0.0
          %v627 = vand.u32 %v253, 4294901760
          %628 = vmatpush1.msra.mxu0 %v627
          %629 = vmatprep.subr.mxu0 0.0
          %v630 = vand.u32 %v252, 4294901760
          %631 = vmatpush1.msra.mxu0 %v630
          %632 = vmatprep.subr.mxu0 0.0
          %v633 = vand.u32 %v251, 4294901760
          %634 = vmatpush1.msra.mxu0 %v633
          %635 = vmatprep.subr.mxu0 0.0
          %v636 = vand.u32 %v250, 4294901760
          %637 = vmatpush1.msra.mxu0 %v636
          %638 = vmatprep.subr.mxu0 0.0
          %v639 = vand.u32 %v249, 4294901760
          %640 = vmatpush1.msra.mxu0 %v639
          %641 = vmatprep.subr.mxu0 0.0
          %v642 = vand.u32 %v248, 4294901760
          %643 = vmatpush1.msra.mxu0 %v642
          %644 = vmatprep.subr.mxu0 0.0
          %v645 = vand.u32 %v247, 4294901760
          %646 = vmatpush1.msra.mxu0 %v645
          %647 = vmatprep.subr.mxu0 0.0
          %v648 = vand.u32 %v246, 4294901760
          %649 = vmatpush1.msra.mxu0 %v648
          %650 = vmatprep.subr.mxu0 0.0
          %v651 = vand.u32 %v245, 4294901760
          %652 = vmatpush1.msra.mxu0 %v651
          %653 = vmatprep.subr.mxu0 0.0
          %v654 = vand.u32 %v244, 4294901760
          %655 = vmatpush1.msra.mxu0 %v654
          %656 = vmatprep.subr.mxu0 0.0
          %v657 = vand.u32 %v243, 4294901760
          %658 = vmatpush1.msra.mxu0 %v657
          %659 = vmatprep.subr.mxu0 0.0
          %660 = vmatpush2.msra.mxu0 0.0
          %661 = vmatprep.subr.mxu0 0.0
          %662 = vmatpush2.msra.mxu0 0.0
          %663 = vmatprep.subr.mxu0 0.0
          %664 = vmatpush2.msra.mxu0 0.0
          %665 = vmatprep.subr.mxu0 0.0
          %666 = vmatpush2.msra.mxu0 0.0
          %667 = vmatprep.subr.mxu0 0.0
          %668 = vmatpush2.msra.mxu0 0.0
          %669 = vmatprep.subr.mxu0 0.0
          %670 = vmatpush2.msra.mxu0 0.0
          %671 = vmatprep.subr.mxu0 0.0
          %672 = vmatpush2.msra.mxu0 0.0
          %673 = vmatprep.subr.mxu0 0.0
          %674 = vmatpush2.msra.mxu0 0.0
          %675 = vmatprep.subr.mxu0 0.0
          %676 = vmatpush2.msra.mxu0 0.0
          %677 = vmatprep.subr.mxu0 0.0
          %678 = vmatpush2.msra.mxu0 0.0
          %679 = vmatprep.subr.mxu0 0.0
          %680 = vmatpush2.msra.mxu0 0.0
          %681 = vmatprep.subr.mxu0 0.0
          %682 = vmatpush2.msra.mxu0 0.0
          %683 = vmatprep.subr.mxu0 0.0
          %684 = vmatpush2.msra.mxu0 0.0
          %685 = vmatprep.subr.mxu0 0.0
          %686 = vmatpush2.msra.mxu0 0.0
          %687 = vmatprep.subr.mxu0 0.0
          %688 = vmatpush2.msra.mxu0 0.0
          %689 = vmatprep.subr.mxu0 0.0
          %690 = vmatpush2.msra.mxu0 0.0
          %691 = vmatprep.mubr.f32.mxu0 0.0
          %v692 = vand.u32 %v263, 4294901760
          %v693 = vsub.f32 %v263, %v692
          %v694 = vand.u32 %v693, 4294901760
          %695 = vmatmul.mubr.f32.gmra.mxu0 %v694
          %v696 = vpop.f32.mrf.mxu0
          %v697 = vadd.f32 %v608, %v696
          %v698 = vpop.f32.mrf.mxu0
          %699 = vdwg.mxu0
          %700 = vmatprep.subr.mxu0 0.0
          %v701 = vand.u32 %v258, 4294901760
          %v702 = vsub.f32 %v258, %v701
          %v703 = vand.u32 %v702, 4294901760
          %704 = vmatpush1.msra.mxu0 %v703
          %705 = vmatprep.subr.mxu0 0.0
          %v706 = vand.u32 %v257, 4294901760
          %v707 = vsub.f32 %v257, %v706
          %v708 = vand.u32 %v707, 4294901760
          %709 = vmatpush1.msra.mxu0 %v708
          %710 = vmatprep.subr.mxu0 0.0
          %v711 = vand.u32 %v256, 4294901760
          %v712 = vsub.f32 %v256, %v711
          %v713 = vand.u32 %v712, 4294901760
          %714 = vmatpush1.msra.mxu0 %v713
          %715 = vmatprep.subr.mxu0 0.0
          %v716 = vand.u32 %v255, 4294901760
          %v717 = vsub.f32 %v255, %v716
          %v718 = vand.u32 %v717, 4294901760
          %719 = vmatpush1.msra.mxu0 %v718
          %720 = vmatprep.subr.mxu0 0.0
          %v721 = vand.u32 %v254, 4294901760
          %v722 = vsub.f32 %v254, %v721
          %v723 = vand.u32 %v722, 4294901760
          %724 = vmatpush1.msra.mxu0 %v723
          %725 = vmatprep.subr.mxu0 0.0
          %v726 = vand.u32 %v253, 4294901760
          %v727 = vsub.f32 %v253, %v726
          %v728 = vand.u32 %v727, 4294901760
          %729 = vmatpush1.msra.mxu0 %v728
          %730 = vmatprep.subr.mxu0 0.0
          %v731 = vand.u32 %v252, 4294901760
          %v732 = vsub.f32 %v252, %v731
          %v733 = vand.u32 %v732, 4294901760
          %734 = vmatpush1.msra.mxu0 %v733
          %735 = vmatprep.subr.mxu0 0.0
          %v736 = vand.u32 %v251, 4294901760
          %v737 = vsub.f32 %v251, %v736
          %v738 = vand.u32 %v737, 4294901760
          %739 = vmatpush1.msra.mxu0 %v738
          %740 = vmatprep.subr.mxu0 0.0
          %v741 = vand.u32 %v250, 4294901760
          %v742 = vsub.f32 %v250, %v741
          %v743 = vand.u32 %v742, 4294901760
          %744 = vmatpush1.msra.mxu0 %v743
          %745 = vmatprep.subr.mxu0 0.0
          %v746 = vand.u32 %v249, 4294901760
          %v747 = vsub.f32 %v249, %v746
          %v748 = vand.u32 %v747, 4294901760
          %749 = vmatpush1.msra.mxu0 %v748
          %750 = vmatprep.subr.mxu0 0.0
          %v751 = vand.u32 %v248, 4294901760
          %v752 = vsub.f32 %v248, %v751
          %v753 = vand.u32 %v752, 4294901760
          %754 = vmatpush1.msra.mxu0 %v753
          %755 = vmatprep.subr.mxu0 0.0
          %v756 = vand.u32 %v247, 4294901760
          %v757 = vsub.f32 %v247, %v756
          %v758 = vand.u32 %v757, 4294901760
          %759 = vmatpush1.msra.mxu0 %v758
          %760 = vmatprep.subr.mxu0 0.0
          %v761 = vand.u32 %v246, 4294901760
          %v762 = vsub.f32 %v246, %v761
          %v763 = vand.u32 %v762, 4294901760
          %764 = vmatpush1.msra.mxu0 %v763
          %765 = vmatprep.subr.mxu0 0.0
          %v766 = vand.u32 %v245, 4294901760
          %v767 = vsub.f32 %v245, %v766
          %v768 = vand.u32 %v767, 4294901760
          %769 = vmatpush1.msra.mxu0 %v768
          %770 = vmatprep.subr.mxu0 0.0
          %v771 = vand.u32 %v244, 4294901760
          %v772 = vsub.f32 %v244, %v771
          %v773 = vand.u32 %v772, 4294901760
          %774 = vmatpush1.msra.mxu0 %v773
          %775 = vmatprep.subr.mxu0 0.0
          %v776 = vand.u32 %v243, 4294901760
          %v777 = vsub.f32 %v243, %v776
          %v778 = vand.u32 %v777, 4294901760
          %779 = vmatpush1.msra.mxu0 %v778
          %780 = vmatprep.subr.mxu0 0.0
          %781 = vmatpush2.msra.mxu0 0.0
          %782 = vmatprep.subr.mxu0 0.0
          %783 = vmatpush2.msra.mxu0 0.0
          %784 = vmatprep.subr.mxu0 0.0
          %785 = vmatpush2.msra.mxu0 0.0
          %786 = vmatprep.subr.mxu0 0.0
          %787 = vmatpush2.msra.mxu0 0.0
          %788 = vmatprep.subr.mxu0 0.0
          %789 = vmatpush2.msra.mxu0 0.0
          %790 = vmatprep.subr.mxu0 0.0
          %791 = vmatpush2.msra.mxu0 0.0
          %792 = vmatprep.subr.mxu0 0.0
          %793 = vmatpush2.msra.mxu0 0.0
          %794 = vmatprep.subr.mxu0 0.0
          %795 = vmatpush2.msra.mxu0 0.0
          %796 = vmatprep.subr.mxu0 0.0
          %797 = vmatpush2.msra.mxu0 0.0
          %798 = vmatprep.subr.mxu0 0.0
          %799 = vmatpush2.msra.mxu0 0.0
          %800 = vmatprep.subr.mxu0 0.0
          %801 = vmatpush2.msra.mxu0 0.0
          %802 = vmatprep.subr.mxu0 0.0
          %803 = vmatpush2.msra.mxu0 0.0
          %804 = vmatprep.subr.mxu0 0.0
          %805 = vmatpush2.msra.mxu0 0.0
          %806 = vmatprep.subr.mxu0 0.0
          %807 = vmatpush2.msra.mxu0 0.0
          %808 = vmatprep.subr.mxu0 0.0
          %809 = vmatpush2.msra.mxu0 0.0
          %810 = vmatprep.subr.mxu0 0.0
          %811 = vmatpush2.msra.mxu0 0.0
          %812 = vmatprep.mubr.f32.mxu0 0.0
          %v813 = vand.u32 %v263, 4294901760
          %814 = vmatmul.mubr.f32.gmra.mxu0 %v813
          %v815 = vpop.f32.mrf.mxu0
          %v816 = vadd.f32 %v697, %v815
          %v817 = vpop.f32.mrf.mxu0
          %818 = vdwg.mxu0
          %819 = vmatprep.subr.mxu0 0.0
          %v820 = vand.u32 %v258, 4294901760
          %821 = vmatpush1.msra.mxu0 %v820
          %822 = vmatprep.subr.mxu0 0.0
          %v823 = vand.u32 %v257, 4294901760
          %824 = vmatpush1.msra.mxu0 %v823
          %825 = vmatprep.subr.mxu0 0.0
          %v826 = vand.u32 %v256, 4294901760
          %827 = vmatpush1.msra.mxu0 %v826
          %828 = vmatprep.subr.mxu0 0.0
          %v829 = vand.u32 %v255, 4294901760
          %830 = vmatpush1.msra.mxu0 %v829
          %831 = vmatprep.subr.mxu0 0.0
          %v832 = vand.u32 %v254, 4294901760
          %833 = vmatpush1.msra.mxu0 %v832
          %834 = vmatprep.subr.mxu0 0.0
          %v835 = vand.u32 %v253, 4294901760
          %836 = vmatpush1.msra.mxu0 %v835
          %837 = vmatprep.subr.mxu0 0.0
          %v838 = vand.u32 %v252, 4294901760
          %839 = vmatpush1.msra.mxu0 %v838
          %840 = vmatprep.subr.mxu0 0.0
          %v841 = vand.u32 %v251, 4294901760
          %842 = vmatpush1.msra.mxu0 %v841
          %843 = vmatprep.subr.mxu0 0.0
          %v844 = vand.u32 %v250, 4294901760
          %845 = vmatpush1.msra.mxu0 %v844
          %846 = vmatprep.subr.mxu0 0.0
          %v847 = vand.u32 %v249, 4294901760
          %848 = vmatpush1.msra.mxu0 %v847
          %849 = vmatprep.subr.mxu0 0.0
          %v850 = vand.u32 %v248, 4294901760
          %851 = vmatpush1.msra.mxu0 %v850
          %852 = vmatprep.subr.mxu0 0.0
          %v853 = vand.u32 %v247, 4294901760
          %854 = vmatpush1.msra.mxu0 %v853
          %855 = vmatprep.subr.mxu0 0.0
          %v856 = vand.u32 %v246, 4294901760
          %857 = vmatpush1.msra.mxu0 %v856
          %858 = vmatprep.subr.mxu0 0.0
          %v859 = vand.u32 %v245, 4294901760
          %860 = vmatpush1.msra.mxu0 %v859
          %861 = vmatprep.subr.mxu0 0.0
          %v862 = vand.u32 %v244, 4294901760
          %863 = vmatpush1.msra.mxu0 %v862
          %864 = vmatprep.subr.mxu0 0.0
          %v865 = vand.u32 %v243, 4294901760
          %866 = vmatpush1.msra.mxu0 %v865
          %867 = vmatprep.subr.mxu0 0.0
          %868 = vmatpush2.msra.mxu0 0.0
          %869 = vmatprep.subr.mxu0 0.0
          %870 = vmatpush2.msra.mxu0 0.0
          %871 = vmatprep.subr.mxu0 0.0
          %872 = vmatpush2.msra.mxu0 0.0
          %873 = vmatprep.subr.mxu0 0.0
          %874 = vmatpush2.msra.mxu0 0.0
          %875 = vmatprep.subr.mxu0 0.0
          %876 = vmatpush2.msra.mxu0 0.0
          %877 = vmatprep.subr.mxu0 0.0
          %878 = vmatpush2.msra.mxu0 0.0
          %879 = vmatprep.subr.mxu0 0.0
          %880 = vmatpush2.msra.mxu0 0.0
          %881 = vmatprep.subr.mxu0 0.0
          %882 = vmatpush2.msra.mxu0 0.0
          %883 = vmatprep.subr.mxu0 0.0
          %884 = vmatpush2.msra.mxu0 0.0
          %885 = vmatprep.subr.mxu0 0.0
          %886 = vmatpush2.msra.mxu0 0.0
          %887 = vmatprep.subr.mxu0 0.0
          %888 = vmatpush2.msra.mxu0 0.0
          %889 = vmatprep.subr.mxu0 0.0
          %890 = vmatpush2.msra.mxu0 0.0
          %891 = vmatprep.subr.mxu0 0.0
          %892 = vmatpush2.msra.mxu0 0.0
          %893 = vmatprep.subr.mxu0 0.0
          %894 = vmatpush2.msra.mxu0 0.0
          %895 = vmatprep.subr.mxu0 0.0
          %896 = vmatpush2.msra.mxu0 0.0
          %897 = vmatprep.subr.mxu0 0.0
          %898 = vmatpush2.msra.mxu0 0.0
          %899 = vmatprep.mubr.f32.mxu0 0.0
          %v900 = vand.u32 %v263, 4294901760
          %901 = vmatmul.mubr.f32.gmra.mxu0 %v900
          %v902 = vpop.f32.mrf.mxu0
          %v903 = vadd.f32 %v816, %v902
          %v904 = vpop.f32.mrf.mxu0
          %905 = vdwg.mxu0
          %v906 = vand.u32 2147483647, %v903
          %v907 = vand.u32 2147483647, %v264
          %v908 = vsub.f32 %v906, %v907
          %v909 = vmul.f32 %v908, %v908
          %v910 = vld [vmem:[#allocation2] sm:$0x1]
          %vm911 = vcmask 130048
          %v912 = vsel %vm911, %v909, 0.0
          %v913 = vrot.slane %v912, 4
          %v914 = vadd.f32 %v912, %v913
          %v915 = vrot.slane %v914, 2
          %v916 = vadd.f32 %v914, %v915
          %v917 = vrot.slane %v916, 1
          %v918 = vadd.f32 %v916, %v917
          %v919 = vadd.f32 %v910, %v918
          %vm920 = vcmask 122880
          %921 = vst.msk [vmem:[#allocation2] sm:$0x1] %vm920, %v919
        $region40: #{tpu_custom_call.1} parent=31 // pred_fallthru
          _
        // Predicated region
        $region41: #{tpu_custom_call.1} parent=31 // pred_check
          %p922 = pneg %p237
        $region42: #{tpu_custom_call.1} parent=31 // pred_check_branch
          %924 = sbr.rel (%p922) target = $region44
        $region43: #{tpu_custom_call.1} parent=31 // pred_region
          %v925 = vld [vmem:[#allocation2] sm:$0x1]
          %vm926 = vcmask 122880
          %v927 = vsel %vm926, %v925, 0.0
          %928 = vadd.xlane.f32.xlu0 %v927
          %v929 = vpop.xlane.xlu0 %928
          %930 = vst [vmem:[%s215] sm:$0x1] %v929
        $region44: #{tpu_custom_call.1} parent=31 // pred_fallthru
          _
        %s931 = sand.u32 %s122, 1
        %s932 = scalar_lea.sflag [#allocation4], %s931
        %s933 = sand.u32 %s122, 1
        %s934 = scalar_lea.vmem [#allocation3], %s933
        // Predicated region
        $region45: #{tpu_custom_call.1} parent=31 // pred_check
          %p935 = pneg %p132
        $region46: #{tpu_custom_call.1} parent=31 // pred_check_branch
          %937 = sbr.rel (%p935) target = $region48
        $region47: #{tpu_custom_call.1} parent=31 // pred_region
          %s939 = ssub.s32 16, 16
          %940 = vsyncadd %s932, %s939
          %s941 = smul.addr %s21, 16
          %s942 = scalar_lea.hbm %s3, %s941
          %s944 = sshll.u32 %s934, 4
          %s945 = int_to_ptr.vmem [resolvable:$true] %s944
          %947 = dma.vmem_to_hbm [thread:$0]  %s945, 16, %s942, %s932
        $region48: #{tpu_custom_call.1} parent=31 // pred_fallthru
          _
      $region32: #{tpu_custom_call.1} parent=5 // pred_fallthru
        _
      %p948 = scmp.le.s32.totalorder 2, %s12
      // Predicated region
      $region49: #{tpu_custom_call.1} parent=5 // pred_check
        %p949 = pneg %p948
      $region50: #{tpu_custom_call.1} parent=5 // pred_check_branch
        %951 = sbr.rel (%p949) target = $region52
      $region51: #{tpu_custom_call.1} parent=5 // pred_region
        %s952 = ssub.s32 %s12, 2
        // Predicated region
        $region53: #{tpu_custom_call.1} parent=51 // pred_check
          %p953 = pneg %p138
        $region54: #{tpu_custom_call.1} parent=51 // pred_check_branch
          %955 = sbr.rel (%p953) target = $region56
        $region55: #{tpu_custom_call.1} parent=51 // pred_region
          %s956 = sand.u32 %s123, 1
          %s957 = scalar_lea.sflag [#allocation4], %s956
          %s958 = sand.u32 %s123, 1
          %s959 = scalar_lea.vmem [#allocation3], %s958
          %960 = dma.done %s957, 16
        $region56: #{tpu_custom_call.1} parent=51 // pred_fallthru
          _
      $region52: #{tpu_custom_call.1} parent=5 // pred_fallthru
        _
    $region6: #{tpu_custom_call.1} parent=1 // loop_footer
      %s16 = sadd.s32 1, %s12
    $region7: #{tpu_custom_call.1} parent=1 // loop_footer_branch
      %11 = sbr.rel target = $region3
    $region8: #{tpu_custom_call.1} parent=1 // loop_exit
      _
    %961 = vsyncpa [#allocation4], 1
    %s962 = scalar_lea.sflag [#allocation4], 1
    %963 = vsyncpa %s962, 1

</llo_original>
